<compile_context>
chip_gen: v7x
topology: tpu7x:2x2x1
jax: 0.10.0
libtpu: 0.0.40
codegen_flags: <defaults>
</compile_context>

<pallas_src>
import jax
import jax.numpy as jnp
from jax.experimental import pallas as pl
from jax.experimental.pallas import tpu as pltpu


def resblock_pallas(x_nchw, w1, b1, w2, b2, nb=None):
    """x_nchw: (N, C, H, W) f32; w*: (3, 3, Cin, Cout) HWIO; b*: (C,)."""
    N, C, H, W = x_nchw.shape
    Hp, Wp = H + 2, W + 2                     # spatially zero-padded grid
    R = Hp * Wp                               # real (padded-grid) pixels per image
    S = ((R + 127) // 128) * 128              # lane-padded slab per image (324 -> 384)
    f32 = jnp.float32

    # ---- batch folding: NB images per grid step on the lane axis ------------------------
    # Keep >= 2 grid steps (>= 4 for larger batches) so v7x's two TensorCores both get
    # pipelined work; on 1-TC v5e/v6e the extra step costs ~0.35 us (negligible).
    if nb is None:
        nb = 1
        min_steps = 4 if N >= 8 else 2
        while N % (nb * 2) == 0 and N // (nb * 2) >= min_steps and (nb * 2) * S <= 4096:
            nb *= 2
    NB = int(nb)
    NG = -(-N // NB)                          # grid steps
    Npad = NG * NB
    WL = NB * S                               # lanes per grid step (multiple of 128)

    # ---- wrapper glue (O(input) layout plumbing only, no 9x replication) ----------------
    x = x_nchw.astype(f32)
    x_p = jnp.pad(x, ((0, Npad - N), (0, 0), (1, 1), (1, 1)))          # zero pad ring
    x_s = jnp.pad(x_p.reshape(Npad, C, R), ((0, 0), (0, 0), (0, S - R)))  # zero lane tail
    x_g = x_s.reshape(NG, NB, C, S).transpose(0, 2, 1, 3).reshape(NG, C, WL)

    # interior-pixel mask (1 = real pixel, 0 = pad ring / tail), one row, revisit-cached.
    # TODO(synk): could be built in-kernel with broadcasted_iota + div/mod by Wp; kept as a
    # tiny DMA'd constant row (constant index_map -> fetched once) for lowering safety.
    r = jnp.arange(S)
    ii, jj = r // Wp, r % Wp
    m_slab = ((ii >= 1) & (ii <= H) & (jj >= 1) & (jj <= W)).astype(f32)
    mask_row = jnp.tile(m_slab, NB).reshape(1, WL)

    # weights folded over the 9 taps: out = W @ patch, W: (Cout, 9*Cin)
    w1m = w1.astype(f32).reshape(9 * C, C).T                           # (C, 9C)
    w2m = w2.astype(f32).reshape(9 * C, C).T                           # (C, 9C)
    b1c = b1.astype(f32).reshape(C, 1)
    b2c = b2.astype(f32).reshape(C, 1)

    # tap lane offsets on the padded grid; tap_t[r] = v[r + off_t]  ==  roll(v, -off_t)
    offs = tuple((dy - 1) * Wp + (dx - 1) for dy in range(3) for dx in range(3))
    shifts = tuple((-o) % WL for o in offs)

    def kernel(x_ref, mask_ref, w1_ref, b1_ref, w2_ref, b2_ref, out_ref, patch_ref):
        # x_ref: (1, C, WL)  mask_ref: (1, WL)  w*: (C, 9C)  b*: (C, 1)
        # out_ref: (1, C, WL)  patch_ref: (9C, WL) VMEM scratch
        xv = x_ref[0]                                   # (C, WL), pixels on lanes
        m = mask_ref[...]                               # (1, WL)

        def stage_taps(v):
            # 9 static lane rotations (XLU) stored lane-aligned into the patch matrix.
            for t, sh in enumerate(shifts):
                rolled = v if sh == 0 else pltpu.roll(v, shift=sh, axis=1)
                patch_ref[t * C:(t + 1) * C, :] = rolled

        # ---- conv1: in-kernel im2col + ONE (C, 9C) @ (9C, WL) MXU matmul ----
        stage_taps(xv)
        h = jnp.dot(w1_ref[...], patch_ref[...], preferred_element_type=jnp.float32)
        h = jnp.maximum(h + b1_ref[...], 0.0) * m       # zero pad ring / tail lanes

        # ---- conv2: same trick on h, one more fat matmul ----
        stage_taps(h)
        y = jnp.dot(w2_ref[...], patch_ref[...], preferred_element_type=jnp.float32)

        # residual + bias; mask so padded/tail lanes of the output are clean zeros
        out_ref[0] = (xv + y + b2_ref[...]) * m

    out_g = pl.pallas_call(
        kernel,
        out_shape=jax.ShapeDtypeStruct((NG, C, WL), f32),
        grid=(NG,),
        in_specs=[
            pl.BlockSpec((1, C, WL), lambda n: (n, 0, 0)),    # x, NB images on lanes
            pl.BlockSpec((1, WL), lambda n: (0, 0)),          # interior mask (revisit-cached)
            pl.BlockSpec((C, 9 * C), lambda n: (0, 0)),       # w1 folded
            pl.BlockSpec((C, 1), lambda n: (0, 0)),           # b1
            pl.BlockSpec((C, 9 * C), lambda n: (0, 0)),       # w2 folded
            pl.BlockSpec((C, 1), lambda n: (0, 0)),           # b2
        ],
        out_specs=pl.BlockSpec((1, C, WL), lambda n: (n, 0, 0)),
        scratch_shapes=[pltpu.VMEM((9 * C, WL), jnp.float32)],
        compiler_params=pltpu.CompilerParams(dimension_semantics=("parallel",)),
    )(x_g, mask_row, w1m, b1c, w2m, b2c)

    # un-group, drop lane tail + pad ring; layout is already NCHW
    out_s = out_g.reshape(NG, C, NB, S).transpose(0, 2, 1, 3).reshape(Npad, C, S)
    out = out_s[:N, :, :R].reshape(N, C, Hp, Wp)[:, :, 1:H + 1, 1:W + 1]
    return out.astype(x_nchw.dtype)


def resblock_ref(x_nchw, w1, b1, w2, b2):
    """Pure-JAX reference (matches PyTorch Conv2d semantics: cross-correlation)."""
    x = jnp.transpose(x_nchw, (0, 2, 3, 1))
    dn = ("NHWC", "HWIO", "NHWC")
    y = jax.lax.conv_general_dilated(x, w1, (1, 1), "SAME", dimension_numbers=dn,
                                     precision=jax.lax.Precision.HIGHEST) + b1
    y = jnp.maximum(y, 0.0)
    y = jax.lax.conv_general_dilated(y, w2, (1, 1), "SAME", dimension_numbers=dn,
                                     precision=jax.lax.Precision.HIGHEST) + b2
    return jnp.transpose(x + y, (0, 3, 1, 2))


if __name__ == "__main__":
    key = jax.random.PRNGKey(0)
    k1, k2, k3, k4, k5 = jax.random.split(key, 5)

    N, C, H, W = 2, 4, 16, 16                      # dim = 4 channels
    x = jax.random.normal(k1, (N, C, H, W), jnp.float32)
    # deterministic synthetic parameters (Conv2d(dim, dim, 3, padding=1, bias=True)), HWIO
    w1 = jax.random.normal(k2, (3, 3, C, C), jnp.float32) * 0.1
    b1 = jax.random.normal(k3, (C,), jnp.float32) * 0.1
    w2 = jax.random.normal(k4, (3, 3, C, C), jnp.float32) * 0.1
    b2 = jax.random.normal(k5, (C,), jnp.float32) * 0.1

    out = jax.jit(resblock_pallas)(x, w1, b1, w2, b2)
    out = jax.block_until_ready(out)

    ref = resblock_ref(x, w1, b1, w2, b2)
    assert out.shape == (N, C, H, W), out.shape
    max_err = float(jnp.max(jnp.abs(out - ref)))
    if not bool(jnp.allclose(out, ref, atol=1e-3, rtol=1e-3)):
        raise AssertionError(f"Pallas ResBlock mismatch, max abs err = {max_err}")

    print("KERNEL_OK")
</pallas_src>

<mosaic_0001>
module attributes {stable_mosaic.version = 11 : i64} {
  func.func @kernel(%arg0: i32, %arg1: memref<1x4x384xf32, #tpu.memory_space<vmem>>, %arg2: memref<1x384xf32, #tpu.memory_space<vmem>>, %arg3: memref<4x36xf32, #tpu.memory_space<vmem>>, %arg4: memref<4x1xf32, #tpu.memory_space<vmem>>, %arg5: memref<4x36xf32, #tpu.memory_space<vmem>>, %arg6: memref<4x1xf32, #tpu.memory_space<vmem>>, %arg7: memref<1x4x384xf32, #tpu.memory_space<vmem>>, %arg8: memref<36x384xf32, #tpu.memory_space<vmem>>) attributes {dimension_semantics = [#tpu.dimension_semantics<parallel>], iteration_bounds = array<i64: 2>, scalar_prefetch = 0 : i64, scratch_operands = 1 : i64, tpu.core_type = #tpu.core_type<tc>, window_params = [{transform_indices = @transform_0, window_bounds = array<i64: 1, 4, 384>}, {pipeline_mode = #tpu.pipeline_mode<synchronous>, transform_indices = @transform_1, window_bounds = array<i64: 1, 384>}, {pipeline_mode = #tpu.pipeline_mode<synchronous>, transform_indices = @transform_2, window_bounds = array<i64: 4, 36>}, {pipeline_mode = #tpu.pipeline_mode<synchronous>, transform_indices = @transform_3, window_bounds = array<i64: 4, 1>}, {pipeline_mode = #tpu.pipeline_mode<synchronous>, transform_indices = @transform_4, window_bounds = array<i64: 4, 36>}, {pipeline_mode = #tpu.pipeline_mode<synchronous>, transform_indices = @transform_5, window_bounds = array<i64: 4, 1>}, {transform_indices = @transform_6, window_bounds = array<i64: 1, 4, 384>}]} {
    %c0 = arith.constant 0 : index
    %c0_0 = arith.constant 0 : index
    %c0_1 = arith.constant 0 : index
    %0 = vector.load %arg1[%c0, %c0_0, %c0_1] : memref<1x4x384xf32, #tpu.memory_space<vmem>>, vector<1x4x384xf32>
    %1 = vector.shape_cast %0 : vector<1x4x384xf32> to vector<4x384xf32>
    %c0_2 = arith.constant 0 : index
    %c0_3 = arith.constant 0 : index
    %2 = vector.load %arg2[%c0_2, %c0_3] : memref<1x384xf32, #tpu.memory_space<vmem>>, vector<1x384xf32>
    %c19_i32 = arith.constant 19 : i32
    %3 = tpu.dynamic_rotate %1 by %c19_i32 dim 1 : vector<4x384xf32>, i32 -> vector<4x384xf32>
    %c0_4 = arith.constant 0 : index
    %c0_5 = arith.constant 0 : index
    %4 = vector.load %arg8[%c0_4, %c0_5] : memref<36x384xf32, #tpu.memory_space<vmem>>, vector<4x384xf32>
    tpu.vector_store %arg8[%c0_4, %c0_5], %3 {strides = array<i32>} : memref<36x384xf32, #tpu.memory_space<vmem>>, vector<4x384xf32>,
    %c18_i32 = arith.constant 18 : i32
    %5 = tpu.dynamic_rotate %1 by %c18_i32 dim 1 : vector<4x384xf32>, i32 -> vector<4x384xf32>
    %c4 = arith.constant 4 : index
    %c0_6 = arith.constant 0 : index
    %6 = vector.load %arg8[%c4, %c0_6] : memref<36x384xf32, #tpu.memory_space<vmem>>, vector<4x384xf32>
    tpu.vector_store %arg8[%c4, %c0_6], %5 {strides = array<i32>} : memref<36x384xf32, #tpu.memory_space<vmem>>, vector<4x384xf32>,
    %c17_i32 = arith.constant 17 : i32
    %7 = tpu.dynamic_rotate %1 by %c17_i32 dim 1 : vector<4x384xf32>, i32 -> vector<4x384xf32>
    %c8 = arith.constant 8 : index
    %c0_7 = arith.constant 0 : index
    %8 = vector.load %arg8[%c8, %c0_7] : memref<36x384xf32, #tpu.memory_space<vmem>>, vector<4x384xf32>
    tpu.vector_store %arg8[%c8, %c0_7], %7 {strides = array<i32>} : memref<36x384xf32, #tpu.memory_space<vmem>>, vector<4x384xf32>,
    %c1_i32 = arith.constant 1 : i32
    %9 = tpu.dynamic_rotate %1 by %c1_i32 dim 1 : vector<4x384xf32>, i32 -> vector<4x384xf32>
    %c12 = arith.constant 12 : index
    %c0_8 = arith.constant 0 : index
    %10 = vector.load %arg8[%c12, %c0_8] : memref<36x384xf32, #tpu.memory_space<vmem>>, vector<4x384xf32>
    tpu.vector_store %arg8[%c12, %c0_8], %9 {strides = array<i32>} : memref<36x384xf32, #tpu.memory_space<vmem>>, vector<4x384xf32>,
    %c16 = arith.constant 16 : index
    %c0_9 = arith.constant 0 : index
    %11 = vector.load %arg8[%c16, %c0_9] : memref<36x384xf32, #tpu.memory_space<vmem>>, vector<4x384xf32>
    tpu.vector_store %arg8[%c16, %c0_9], %1 {strides = array<i32>} : memref<36x384xf32, #tpu.memory_space<vmem>>, vector<4x384xf32>,
    %c383_i32 = arith.constant 383 : i32
    %12 = tpu.dynamic_rotate %1 by %c383_i32 dim 1 : vector<4x384xf32>, i32 -> vector<4x384xf32>
    %c20 = arith.constant 20 : index
    %c0_10 = arith.constant 0 : index
    %13 = vector.load %arg8[%c20, %c0_10] : memref<36x384xf32, #tpu.memory_space<vmem>>, vector<4x384xf32>
    tpu.vector_store %arg8[%c20, %c0_10], %12 {strides = array<i32>} : memref<36x384xf32, #tpu.memory_space<vmem>>, vector<4x384xf32>,
    %c367_i32 = arith.constant 367 : i32
    %14 = tpu.dynamic_rotate %1 by %c367_i32 dim 1 : vector<4x384xf32>, i32 -> vector<4x384xf32>
    %c24 = arith.constant 24 : index
    %c0_11 = arith.constant 0 : index
    %15 = vector.load %arg8[%c24, %c0_11] : memref<36x384xf32, #tpu.memory_space<vmem>>, vector<4x384xf32>
    tpu.vector_store %arg8[%c24, %c0_11], %14 {strides = array<i32>} : memref<36x384xf32, #tpu.memory_space<vmem>>, vector<4x384xf32>,
    %c366_i32 = arith.constant 366 : i32
    %16 = tpu.dynamic_rotate %1 by %c366_i32 dim 1 : vector<4x384xf32>, i32 -> vector<4x384xf32>
    %c28 = arith.constant 28 : index
    %c0_12 = arith.constant 0 : index
    %17 = vector.load %arg8[%c28, %c0_12] : memref<36x384xf32, #tpu.memory_space<vmem>>, vector<4x384xf32>
    tpu.vector_store %arg8[%c28, %c0_12], %16 {strides = array<i32>} : memref<36x384xf32, #tpu.memory_space<vmem>>, vector<4x384xf32>,
    %c365_i32 = arith.constant 365 : i32
    %18 = tpu.dynamic_rotate %1 by %c365_i32 dim 1 : vector<4x384xf32>, i32 -> vector<4x384xf32>
    %c32 = arith.constant 32 : index
    %c0_13 = arith.constant 0 : index
    %19 = vector.load %arg8[%c32, %c0_13] : memref<36x384xf32, #tpu.memory_space<vmem>>, vector<4x384xf32>
    tpu.vector_store %arg8[%c32, %c0_13], %18 {strides = array<i32>} : memref<36x384xf32, #tpu.memory_space<vmem>>, vector<4x384xf32>,
    %c0_14 = arith.constant 0 : index
    %c0_15 = arith.constant 0 : index
    %20 = vector.load %arg3[%c0_14, %c0_15] : memref<4x36xf32, #tpu.memory_space<vmem>>, vector<4x36xf32>
    %c0_16 = arith.constant 0 : index
    %c0_17 = arith.constant 0 : index
    %21 = vector.load %arg8[%c0_16, %c0_17] : memref<36x384xf32, #tpu.memory_space<vmem>>, vector<36x384xf32>
    %cst = arith.constant dense<0.000000e+00> : vector<4x384xf32>
    %22 = tpu.matmul %20, %21, %cst {dimension_numbers = #tpu.dot_dimension_numbers<[1], [0], [0], [1], [0, 0, 1, 1], [], []>} : vector<4x36xf32>, vector<36x384xf32>, vector<4x384xf32> -> vector<4x384xf32>
    %c0_18 = arith.constant 0 : index
    %c0_19 = arith.constant 0 : index
    %23 = vector.load %arg4[%c0_18, %c0_19] : memref<4x1xf32, #tpu.memory_space<vmem>>, vector<4x1xf32>
    %24 = vector.broadcast %23 : vector<4x1xf32> to vector<4x384xf32>
    %25 = arith.addf %22, %24 : vector<4x384xf32>
    %cst_20 = arith.constant 0.000000e+00 : f32
    %26 = vector.broadcast %cst_20 : f32 to vector<4x384xf32>
    %27 = arith.maximumf %25, %26 : vector<4x384xf32>
    %28 = vector.broadcast %2 : vector<1x384xf32> to vector<4x384xf32>
    %29 = arith.mulf %27, %28 : vector<4x384xf32>
    %c19_i32_21 = arith.constant 19 : i32
    %30 = tpu.dynamic_rotate %29 by %c19_i32_21 dim 1 : vector<4x384xf32>, i32 -> vector<4x384xf32>
    %c0_22 = arith.constant 0 : index
    %c0_23 = arith.constant 0 : index
    %31 = vector.load %arg8[%c0_22, %c0_23] : memref<36x384xf32, #tpu.memory_space<vmem>>, vector<4x384xf32>
    tpu.vector_store %arg8[%c0_22, %c0_23], %30 {strides = array<i32>} : memref<36x384xf32, #tpu.memory_space<vmem>>, vector<4x384xf32>,
    %c18_i32_24 = arith.constant 18 : i32
    %32 = tpu.dynamic_rotate %29 by %c18_i32_24 dim 1 : vector<4x384xf32>, i32 -> vector<4x384xf32>
    %c4_25 = arith.constant 4 : index
    %c0_26 = arith.constant 0 : index
    %33 = vector.load %arg8[%c4_25, %c0_26] : memref<36x384xf32, #tpu.memory_space<vmem>>, vector<4x384xf32>
    tpu.vector_store %arg8[%c4_25, %c0_26], %32 {strides = array<i32>} : memref<36x384xf32, #tpu.memory_space<vmem>>, vector<4x384xf32>,
    %c17_i32_27 = arith.constant 17 : i32
    %34 = tpu.dynamic_rotate %29 by %c17_i32_27 dim 1 : vector<4x384xf32>, i32 -> vector<4x384xf32>
    %c8_28 = arith.constant 8 : index
    %c0_29 = arith.constant 0 : index
    %35 = vector.load %arg8[%c8_28, %c0_29] : memref<36x384xf32, #tpu.memory_space<vmem>>, vector<4x384xf32>
    tpu.vector_store %arg8[%c8_28, %c0_29], %34 {strides = array<i32>} : memref<36x384xf32, #tpu.memory_space<vmem>>, vector<4x384xf32>,
    %c1_i32_30 = arith.constant 1 : i32
    %36 = tpu.dynamic_rotate %29 by %c1_i32_30 dim 1 : vector<4x384xf32>, i32 -> vector<4x384xf32>
    %c12_31 = arith.constant 12 : index
    %c0_32 = arith.constant 0 : index
    %37 = vector.load %arg8[%c12_31, %c0_32] : memref<36x384xf32, #tpu.memory_space<vmem>>, vector<4x384xf32>
    tpu.vector_store %arg8[%c12_31, %c0_32], %36 {strides = array<i32>} : memref<36x384xf32, #tpu.memory_space<vmem>>, vector<4x384xf32>,
    %c16_33 = arith.constant 16 : index
    %c0_34 = arith.constant 0 : index
    %38 = vector.load %arg8[%c16_33, %c0_34] : memref<36x384xf32, #tpu.memory_space<vmem>>, vector<4x384xf32>
    tpu.vector_store %arg8[%c16_33, %c0_34], %29 {strides = array<i32>} : memref<36x384xf32, #tpu.memory_space<vmem>>, vector<4x384xf32>,
    %c383_i32_35 = arith.constant 383 : i32
    %39 = tpu.dynamic_rotate %29 by %c383_i32_35 dim 1 : vector<4x384xf32>, i32 -> vector<4x384xf32>
    %c20_36 = arith.constant 20 : index
    %c0_37 = arith.constant 0 : index
    %40 = vector.load %arg8[%c20_36, %c0_37] : memref<36x384xf32, #tpu.memory_space<vmem>>, vector<4x384xf32>
    tpu.vector_store %arg8[%c20_36, %c0_37], %39 {strides = array<i32>} : memref<36x384xf32, #tpu.memory_space<vmem>>, vector<4x384xf32>,
    %c367_i32_38 = arith.constant 367 : i32
    %41 = tpu.dynamic_rotate %29 by %c367_i32_38 dim 1 : vector<4x384xf32>, i32 -> vector<4x384xf32>
    %c24_39 = arith.constant 24 : index
    %c0_40 = arith.constant 0 : index
    %42 = vector.load %arg8[%c24_39, %c0_40] : memref<36x384xf32, #tpu.memory_space<vmem>>, vector<4x384xf32>
    tpu.vector_store %arg8[%c24_39, %c0_40], %41 {strides = array<i32>} : memref<36x384xf32, #tpu.memory_space<vmem>>, vector<4x384xf32>,
    %c366_i32_41 = arith.constant 366 : i32
    %43 = tpu.dynamic_rotate %29 by %c366_i32_41 dim 1 : vector<4x384xf32>, i32 -> vector<4x384xf32>
    %c28_42 = arith.constant 28 : index
    %c0_43 = arith.constant 0 : index
    %44 = vector.load %arg8[%c28_42, %c0_43] : memref<36x384xf32, #tpu.memory_space<vmem>>, vector<4x384xf32>
    tpu.vector_store %arg8[%c28_42, %c0_43], %43 {strides = array<i32>} : memref<36x384xf32, #tpu.memory_space<vmem>>, vector<4x384xf32>,
    %c365_i32_44 = arith.constant 365 : i32
    %45 = tpu.dynamic_rotate %29 by %c365_i32_44 dim 1 : vector<4x384xf32>, i32 -> vector<4x384xf32>
    %c32_45 = arith.constant 32 : index
    %c0_46 = arith.constant 0 : index
    %46 = vector.load %arg8[%c32_45, %c0_46] : memref<36x384xf32, #tpu.memory_space<vmem>>, vector<4x384xf32>
    tpu.vector_store %arg8[%c32_45, %c0_46], %45 {strides = array<i32>} : memref<36x384xf32, #tpu.memory_space<vmem>>, vector<4x384xf32>,
    %c0_47 = arith.constant 0 : index
    %c0_48 = arith.constant 0 : index
    %47 = vector.load %arg5[%c0_47, %c0_48] : memref<4x36xf32, #tpu.memory_space<vmem>>, vector<4x36xf32>
    %c0_49 = arith.constant 0 : index
    %c0_50 = arith.constant 0 : index
    %48 = vector.load %arg8[%c0_49, %c0_50] : memref<36x384xf32, #tpu.memory_space<vmem>>, vector<36x384xf32>
    %cst_51 = arith.constant dense<0.000000e+00> : vector<4x384xf32>
    %49 = tpu.matmul %47, %48, %cst_51 {dimension_numbers = #tpu.dot_dimension_numbers<[1], [0], [0], [1], [0, 0, 1, 1], [], []>} : vector<4x36xf32>, vector<36x384xf32>, vector<4x384xf32> -> vector<4x384xf32>
    %50 = arith.addf %1, %49 : vector<4x384xf32>
    %c0_52 = arith.constant 0 : index
    %c0_53 = arith.constant 0 : index
    %51 = vector.load %arg6[%c0_52, %c0_53] : memref<4x1xf32, #tpu.memory_space<vmem>>, vector<4x1xf32>
    %52 = vector.broadcast %51 : vector<4x1xf32> to vector<4x384xf32>
    %53 = arith.addf %50, %52 : vector<4x384xf32>
    %54 = vector.broadcast %2 : vector<1x384xf32> to vector<4x384xf32>
    %55 = arith.mulf %53, %54 : vector<4x384xf32>
    %c0_54 = arith.constant 0 : index
    %c0_55 = arith.constant 0 : index
    %c0_56 = arith.constant 0 : index
    %56 = vector.load %arg7[%c0_54, %c0_55, %c0_56] : memref<1x4x384xf32, #tpu.memory_space<vmem>>, vector<1x4x384xf32>
    %57 = vector.shape_cast %56 : vector<1x4x384xf32> to vector<4x384xf32>
    %58 = vector.shape_cast %55 : vector<4x384xf32> to vector<1x4x384xf32>
    tpu.vector_store %arg7[%c0_54, %c0_55, %c0_56], %58 {strides = array<i32>} : memref<1x4x384xf32, #tpu.memory_space<vmem>>, vector<1x4x384xf32>,
    return
  }
  func.func @transform_0(%arg0: i32) -> (i32, i32, i32) {
    %c0_i32 = arith.constant 0 : i32
    %c0_i32_0 = arith.constant 0 : i32
    %c0_i32_1 = arith.constant 0 : i32
    return %arg0, %c0_i32, %c0_i32_0 : i32, i32, i32
  }
  func.func @transform_1(%arg0: i32) -> (i32, i32) {
    %c0_i32 = arith.constant 0 : i32
    %c0_i32_0 = arith.constant 0 : i32
    %c0_i32_1 = arith.constant 0 : i32
    return %c0_i32, %c0_i32_0 : i32, i32
  }
  func.func @transform_2(%arg0: i32) -> (i32, i32) {
    %c0_i32 = arith.constant 0 : i32
    %c0_i32_0 = arith.constant 0 : i32
    %c0_i32_1 = arith.constant 0 : i32
    return %c0_i32, %c0_i32_0 : i32, i32
  }
  func.func @transform_3(%arg0: i32) -> (i32, i32) {
    %c0_i32 = arith.constant 0 : i32
    %c0_i32_0 = arith.constant 0 : i32
    %c0_i32_1 = arith.constant 0 : i32
    return %c0_i32, %c0_i32_0 : i32, i32
  }
  func.func @transform_4(%arg0: i32) -> (i32, i32) {
    %c0_i32 = arith.constant 0 : i32
    %c0_i32_0 = arith.constant 0 : i32
    %c0_i32_1 = arith.constant 0 : i32
    return %c0_i32, %c0_i32_0 : i32, i32
  }
  func.func @transform_5(%arg0: i32) -> (i32, i32) {
    %c0_i32 = arith.constant 0 : i32
    %c0_i32_0 = arith.constant 0 : i32
    %c0_i32_1 = arith.constant 0 : i32
    return %c0_i32, %c0_i32_0 : i32, i32
  }
  func.func @transform_6(%arg0: i32) -> (i32, i32, i32) {
    %c0_i32 = arith.constant 0 : i32
    %c0_i32_0 = arith.constant 0 : i32
    %c0_i32_1 = arith.constant 0 : i32
    return %arg0, %c0_i32, %c0_i32_0 : i32, i32, i32
  }
}

</mosaic_0001>

<llo_original>
// kernel: resblock_pallas.1
$region0: #{resblock_pallas.1}
  #allocation0 [shape = 'u32[]', space=smem, size = 0x4, offset = 0x4, fixed_abs, tag = 'smem constant byte address 0x4 - core index']
  #allocation1 [shape = 'u32[144,128]{1,0:T(1,128)}', space=vmem, size = 0x12000, scoped, tag = 'internal scratch']
  #allocation2 [shape = 'f32[36,384]{1,0:T(8,128)}', space=vmem, size = 0xf000, scoped, tag = 'scratch operand']
  %s0 = inlined_call_operand.vmem [shape: f32[2,4,384], index: 0, kind: input, shape index: {}]
  %s1 = inlined_call_operand.vmem [shape: f32[1,384], index: 1, kind: input, shape index: {}]
  %s2 = inlined_call_operand.vmem [shape: f32[4,36], index: 2, kind: input, shape index: {}]
  %s3 = inlined_call_operand.vmem [shape: f32[4,1], index: 3, kind: input, shape index: {}]
  %s4 = inlined_call_operand.vmem [shape: f32[4,36], index: 4, kind: input, shape index: {}]
  %s5 = inlined_call_operand.vmem [shape: f32[4,1], index: 5, kind: input, shape index: {}]
  %s6 = inlined_call_operand.vmem [shape: f32[2,4,384], index: 6, kind: output, shape index: {}]
  %s7 = sld [smem:[#allocation0]]
  $region57: #{resblock_pallas.1} parent=0
    _
  %s9 = ssub.s32 1, %s7
  %s10 = scalar_select 0, %s9, %s7
  loop: start=0, step=1, limit=4
  $region2: #{resblock_pallas.1} parent=0 // loop_pre_header
    _
  $region3: #{resblock_pallas.1} parent=0 // loop_header
    %s12 = sphi 0, %s16
    %p13 = scmp.ge.s32.totalorder %s12, 4
    %s22 = sphi 0, %s24
    %s25 = sphi 0, %s22
    %s26 = sphi 0, %s25
    %s42 = sphi 0, %s26
    %s46 = sphi 0, %s46
    %s48 = sphi 0, %s46
    %s49 = sphi 0, %s48
    %s63 = sphi 0, %s49
    %s67 = sphi 0, %s67
    %s69 = sphi 0, %s67
    %s70 = sphi 0, %s69
    %s84 = sphi 0, %s70
    %s88 = sphi 0, %s88
    %s90 = sphi 0, %s88
    %s91 = sphi 0, %s90
    %s105 = sphi 0, %s91
    %s109 = sphi 0, %s109
    %s111 = sphi 0, %s109
    %s112 = sphi 0, %s111
    %s126 = sphi 0, %s112
    %s130 = sphi 0, %s130
    %s132 = sphi 0, %s130
    %s133 = sphi 0, %s132
    %s147 = sphi 0, %s133
    %s153 = sphi 0, %s155
    %s156 = sphi 0, %s153
    %s157 = sphi 0, %s156
    %s173 = sphi 0, %s157
  $region4: #{resblock_pallas.1} parent=0 // loop_header_branch
    %15 = sbr.rel (%p13) target = $region8
  $region5: #{resblock_pallas.1} parent=0 // loop_body
    %s17 = ssub.s32 %s12, 1
    %s18 = ssub.s32 %s12, 2
    %s19 = sadd.s32 %s12, 1
    %s20 = ssub.s32 %s12, %s19
    %p21 = scmp.eq.s32.totalorder %s20, 0
    %s23 = sadd.s32 %s22, 1
    %s24 = scalar_select %p21, %s22, %s23
    %p27 = pneg %p21
    %p28 = scmp.eq.s32.totalorder %s12, 1
    %p29 = por %p27, %p28
    %p30 = scmp.ne.s32.totalorder %s22, %s25
    %p31 = scmp.eq.s32.totalorder %s12, 0
    %p32 = por %p30, %p31
    %p33 = scmp.ne.s32.totalorder %s22, %s25
    %p34 = scmp.eq.s32.totalorder %s17, 1
    %p35 = por %p33, %p34
    %p36 = scmp.ne.s32.totalorder %s25, %s26
    %p37 = scmp.eq.s32.totalorder %s17, 0
    %p38 = por %p36, %p37
    %p39 = scmp.ne.s32.totalorder %s25, %s26
    %p40 = scmp.eq.s32.totalorder %s18, 1
    %p41 = por %p39, %p40
    %p43 = scmp.ne.s32.totalorder %s26, %s42
    %p44 = scmp.eq.s32.totalorder %s18, 0
    %p45 = por %p43, %p44
    %s47 = sadd.s32 %s46, 1
    %p50 = scmp.eq.s32.totalorder %s12, 1
    %p51 = scmp.ne.s32.totalorder %s46, %s48
    %p52 = scmp.eq.s32.totalorder %s12, 0
    %p53 = por %p51, %p52
    %p54 = scmp.ne.s32.totalorder %s46, %s48
    %p55 = scmp.eq.s32.totalorder %s17, 1
    %p56 = por %p54, %p55
    %p57 = scmp.ne.s32.totalorder %s48, %s49
    %p58 = scmp.eq.s32.totalorder %s17, 0
    %p59 = por %p57, %p58
    %p60 = scmp.ne.s32.totalorder %s48, %s49
    %p61 = scmp.eq.s32.totalorder %s18, 1
    %p62 = por %p60, %p61
    %p64 = scmp.ne.s32.totalorder %s49, %s63
    %p65 = scmp.eq.s32.totalorder %s18, 0
    %p66 = por %p64, %p65
    %s68 = sadd.s32 %s67, 1
    %p71 = scmp.eq.s32.totalorder %s12, 1
    %p72 = scmp.ne.s32.totalorder %s67, %s69
    %p73 = scmp.eq.s32.totalorder %s12, 0
    %p74 = por %p72, %p73
    %p75 = scmp.ne.s32.totalorder %s67, %s69
    %p76 = scmp.eq.s32.totalorder %s17, 1
    %p77 = por %p75, %p76
    %p78 = scmp.ne.s32.totalorder %s69, %s70
    %p79 = scmp.eq.s32.totalorder %s17, 0
    %p80 = por %p78, %p79
    %p81 = scmp.ne.s32.totalorder %s69, %s70
    %p82 = scmp.eq.s32.totalorder %s18, 1
    %p83 = por %p81, %p82
    %p85 = scmp.ne.s32.totalorder %s70, %s84
    %p86 = scmp.eq.s32.totalorder %s18, 0
    %p87 = por %p85, %p86
    %s89 = sadd.s32 %s88, 1
    %p92 = scmp.eq.s32.totalorder %s12, 1
    %p93 = scmp.ne.s32.totalorder %s88, %s90
    %p94 = scmp.eq.s32.totalorder %s12, 0
    %p95 = por %p93, %p94
    %p96 = scmp.ne.s32.totalorder %s88, %s90
    %p97 = scmp.eq.s32.totalorder %s17, 1
    %p98 = por %p96, %p97
    %p99 = scmp.ne.s32.totalorder %s90, %s91
    %p100 = scmp.eq.s32.totalorder %s17, 0
    %p101 = por %p99, %p100
    %p102 = scmp.ne.s32.totalorder %s90, %s91
    %p103 = scmp.eq.s32.totalorder %s18, 1
    %p104 = por %p102, %p103
    %p106 = scmp.ne.s32.totalorder %s91, %s105
    %p107 = scmp.eq.s32.totalorder %s18, 0
    %p108 = por %p106, %p107
    %s110 = sadd.s32 %s109, 1
    %p113 = scmp.eq.s32.totalorder %s12, 1
    %p114 = scmp.ne.s32.totalorder %s109, %s111
    %p115 = scmp.eq.s32.totalorder %s12, 0
    %p116 = por %p114, %p115
    %p117 = scmp.ne.s32.totalorder %s109, %s111
    %p118 = scmp.eq.s32.totalorder %s17, 1
    %p119 = por %p117, %p118
    %p120 = scmp.ne.s32.totalorder %s111, %s112
    %p121 = scmp.eq.s32.totalorder %s17, 0
    %p122 = por %p120, %p121
    %p123 = scmp.ne.s32.totalorder %s111, %s112
    %p124 = scmp.eq.s32.totalorder %s18, 1
    %p125 = por %p123, %p124
    %p127 = scmp.ne.s32.totalorder %s112, %s126
    %p128 = scmp.eq.s32.totalorder %s18, 0
    %p129 = por %p127, %p128
    %s131 = sadd.s32 %s130, 1
    %p134 = scmp.eq.s32.totalorder %s12, 1
    %p135 = scmp.ne.s32.totalorder %s130, %s132
    %p136 = scmp.eq.s32.totalorder %s12, 0
    %p137 = por %p135, %p136
    %p138 = scmp.ne.s32.totalorder %s130, %s132
    %p139 = scmp.eq.s32.totalorder %s17, 1
    %p140 = por %p138, %p139
    %p141 = scmp.ne.s32.totalorder %s132, %s133
    %p142 = scmp.eq.s32.totalorder %s17, 0
    %p143 = por %p141, %p142
    %p144 = scmp.ne.s32.totalorder %s132, %s133
    %p145 = scmp.eq.s32.totalorder %s18, 1
    %p146 = por %p144, %p145
    %p148 = scmp.ne.s32.totalorder %s133, %s147
    %p149 = scmp.eq.s32.totalorder %s18, 0
    %p150 = por %p148, %p149
    %s151 = ssub.s32 %s12, %s19
    %p152 = scmp.eq.s32.totalorder %s151, 0
    %s154 = sadd.s32 %s153, 1
    %s155 = scalar_select %p152, %s153, %s154
    %p158 = pneg %p152
    %p159 = scmp.eq.s32.totalorder %s12, 1
    %p160 = por %p158, %p159
    %p161 = scmp.ne.s32.totalorder %s153, %s156
    %p162 = scmp.eq.s32.totalorder %s12, 0
    %p163 = por %p161, %p162
    %p164 = scmp.ne.s32.totalorder %s153, %s156
    %p165 = scmp.eq.s32.totalorder %s17, 1
    %p166 = por %p164, %p165
    %p167 = scmp.ne.s32.totalorder %s156, %s157
    %p168 = scmp.eq.s32.totalorder %s17, 0
    %p169 = por %p167, %p168
    %p170 = scmp.ne.s32.totalorder %s156, %s157
    %p171 = scmp.eq.s32.totalorder %s18, 1
    %p172 = por %p170, %p171
    %p174 = scmp.ne.s32.totalorder %s157, %s173
    %p175 = scmp.eq.s32.totalorder %s18, 0
    %p176 = por %p174, %p175
    %p177 = scmp.le.s32.totalorder 1, %s12
    %p178 = scmp.lt.s32.totalorder %s12, 3
    %p179 = pnand %p177, %p178
    %p180 = pneg %p179
    // Predicated region
    $region9: #{resblock_pallas.1} parent=5 // pred_check
      _
    $region10: #{resblock_pallas.1} parent=5 // pred_check_branch
      %182 = sbr.rel (%p179) target = $region12
    $region11: #{resblock_pallas.1} parent=5 // pred_region
      %s183 = ssub.s32 %s12, 1
      // Predicated region
      $region13: #{resblock_pallas.1} parent=11 // pred_check
        %p184 = pneg %p59
      $region14: #{resblock_pallas.1} parent=11 // pred_check_branch
        %186 = sbr.rel (%p184) target = $region16
      $region15: #{resblock_pallas.1} parent=11 // pred_region
        _
      $region16: #{resblock_pallas.1} parent=11 // pred_fallthru
        _
      // Predicated region
      $region17: #{resblock_pallas.1} parent=11 // pred_check
        %p187 = pneg %p80
      $region18: #{resblock_pallas.1} parent=11 // pred_check_branch
        %189 = sbr.rel (%p187) target = $region20
      $region19: #{resblock_pallas.1} parent=11 // pred_region
        _
      $region20: #{resblock_pallas.1} parent=11 // pred_fallthru
        _
      // Predicated region
      $region21: #{resblock_pallas.1} parent=11 // pred_check
        %p190 = pneg %p101
      $region22: #{resblock_pallas.1} parent=11 // pred_check_branch
        %192 = sbr.rel (%p190) target = $region24
      $region23: #{resblock_pallas.1} parent=11 // pred_region
        _
      $region24: #{resblock_pallas.1} parent=11 // pred_fallthru
        _
      // Predicated region
      $region25: #{resblock_pallas.1} parent=11 // pred_check
        %p193 = pneg %p122
      $region26: #{resblock_pallas.1} parent=11 // pred_check_branch
        %195 = sbr.rel (%p193) target = $region28
      $region27: #{resblock_pallas.1} parent=11 // pred_region
        _
      $region28: #{resblock_pallas.1} parent=11 // pred_fallthru
        _
      // Predicated region
      $region29: #{resblock_pallas.1} parent=11 // pred_check
        %p196 = pneg %p143
      $region30: #{resblock_pallas.1} parent=11 // pred_check_branch
        %198 = sbr.rel (%p196) target = $region32
      $region31: #{resblock_pallas.1} parent=11 // pred_region
        _
      $region32: #{resblock_pallas.1} parent=11 // pred_fallthru
        _
    $region12: #{resblock_pallas.1} parent=5 // pred_fallthru
      _
    %p199 = scmp.lt.s32.totalorder %s12, 2
    // Predicated region
    $region33: #{resblock_pallas.1} parent=5 // pred_check
      %p200 = pneg %p199
    $region34: #{resblock_pallas.1} parent=5 // pred_check_branch
      %202 = sbr.rel (%p200) target = $region36
    $region35: #{resblock_pallas.1} parent=5 // pred_region
      // Predicated region
      $region37: #{resblock_pallas.1} parent=35 // pred_check
        %p203 = pneg %p32
      $region38: #{resblock_pallas.1} parent=35 // pred_check_branch
        %205 = sbr.rel (%p203) target = $region40
      $region39: #{resblock_pallas.1} parent=35 // pred_region
        %p206 = scmp.lt.s32.totalorder %s12, 1
        %s207 = scalar_select %p206, %s12, 1
        %s208 = smul.addr %s207, 3
        %s209 = smul.addr %s208, 4
        %s210 = scalar_lea.vmem %s0, %s209
      $region40: #{resblock_pallas.1} parent=35 // pred_fallthru
        _
    $region36: #{resblock_pallas.1} parent=5 // pred_fallthru
      _
    %p211 = scmp.le.s32.totalorder 1, %s12
    %p212 = scmp.lt.s32.totalorder %s12, 3
    %p213 = pnand %p211, %p212
    %p214 = pneg %p213
    // Predicated region
    $region41: #{resblock_pallas.1} parent=5 // pred_check
      _
    $region42: #{resblock_pallas.1} parent=5 // pred_check_branch
      %216 = sbr.rel (%p213) target = $region44
    $region43: #{resblock_pallas.1} parent=5 // pred_region
      %s217 = ssub.s32 %s12, 1
      %p218 = scmp.lt.s32.totalorder %s17, 1
      %s219 = scalar_select %p218, %s17, 1
      %s220 = smul.addr %s219, 3
      %s221 = smul.addr %s220, 4
      %s222 = scalar_lea.vmem %s0, %s221
      %p223 = pneg %p38
      %p224 = pneg %p35
      %p225 = pneg %p59
      %p226 = pneg %p56
      %p227 = pneg %p80
      %p228 = pneg %p77
      %p229 = pneg %p101
      %p230 = pneg %p98
      %p231 = pneg %p122
      %p232 = pneg %p119
      %p233 = pneg %p143
      %p234 = pneg %p140
      %p235 = pneg %p169
      %p236 = pneg %p166
      %p237 = scmp.lt.s32.totalorder %s17, 1
      %s238 = scalar_select %p237, %s17, 1
      %s239 = smul.addr %s238, 3
      %s240 = smul.addr %s239, 4
      %s241 = scalar_lea.vmem %s6, %s240
      %p242 = scmp.lt.s32.totalorder %s17, 1
      %s243 = scalar_select %p242, %s17, 1
      %s244 = smul.addr %s243, 3
      %s245 = smul.addr %s244, 4
      %s246 = scalar_lea.vmem %s0, %s245
      %p247 = scmp.lt.s32.totalorder %s17, 1
      %s248 = scalar_select %p247, %s17, 1
      %s249 = smul.addr %s248, 3
      %s250 = smul.addr %s249, 4
      %s251 = scalar_lea.vmem %s6, %s250
      %v252 = vld [vmem:[%s246] sm:$0xff]
      %v253 = vld [vmem:[%s246 + $0x8] sm:$0xf]
      %v254 = vld [vmem:[%s1] sm:$0x7]
      %v256 = vcombine.high %v252, %v252
      %258 = vrot.lane.b32.xlu0 %v252, 19
      %v259 = vpop.permute.xlu0 %258
      %260 = vrot.lane.b32.xlu0 %v256, 19
      %v261 = vpop.permute.xlu0 %260
      %262 = vrot.lane.b32.xlu0 %v253, 19
      %v263 = vpop.permute.xlu0 %262
      %v264 = vlaneseq
      %v265 = vand.u32 %v264, 127
      %vm266 = vcmp.lt.s32.totalorder %v265, 19
      %v267 = vsel %vm266, %v261, %v263
      %v268 = vsel %vm266, %v259, %v261
      %v269 = vsel %vm266, %v263, %v259
      %270 = vst [vmem:[#allocation2] sm:$0xf] %v269
      %271 = vst [vmem:[#allocation2 + $0x8] sm:$0xf] %v268
      %272 = vst [vmem:[#allocation2 + $0x10] sm:$0xf] %v267
      %273 = vrot.lane.b32.xlu0 %v252, 18
      %v274 = vpop.permute.xlu0 %273
      %275 = vrot.lane.b32.xlu0 %v256, 18
      %v276 = vpop.permute.xlu0 %275
      %277 = vrot.lane.b32.xlu0 %v253, 18
      %v278 = vpop.permute.xlu0 %277
      %vm279 = vcmp.lt.s32.totalorder %v265, 18
      %v280 = vsel %vm279, %v276, %v278
      %v281 = vsel %vm279, %v274, %v276
      %v282 = vsel %vm279, %v278, %v274
      %v286 = vrot.slane %v282, 4
      %v287 = vrot.slane %v281, 4
      %v288 = vrot.slane %v280, 4
      %292 = vst [vmem:[#allocation2] sm:$0xf0] %v286
      %293 = vst [vmem:[#allocation2 + $0x8] sm:$0xf0] %v287
      %294 = vst [vmem:[#allocation2 + $0x10] sm:$0xf0] %v288
      %295 = vrot.lane.b32.xlu0 %v252, 17
      %v296 = vpop.permute.xlu0 %295
      %297 = vrot.lane.b32.xlu0 %v256, 17
      %v298 = vpop.permute.xlu0 %297
      %299 = vrot.lane.b32.xlu0 %v253, 17
      %v300 = vpop.permute.xlu0 %299
      %vm301 = vcmp.lt.s32.totalorder %v265, 17
      %v302 = vsel %vm301, %v298, %v300
      %v303 = vsel %vm301, %v296, %v298
      %v304 = vsel %vm301, %v300, %v296
      %305 = vst [vmem:[#allocation2 + $0x18] sm:$0xf] %v304
      %306 = vst [vmem:[#allocation2 + $0x20] sm:$0xf] %v303
      %307 = vst [vmem:[#allocation2 + $0x28] sm:$0xf] %v302
      %308 = vrot.lane.b32.xlu0 %v252, 1
      %v309 = vpop.permute.xlu0 %308
      %310 = vrot.lane.b32.xlu0 %v256, 1
      %v311 = vpop.permute.xlu0 %310
      %312 = vrot.lane.b32.xlu0 %v253, 1
      %v313 = vpop.permute.xlu0 %312
      %vm314 = vcmp.lt.s32.totalorder %v265, 1
      %v315 = vsel %vm314, %v311, %v313
      %v316 = vsel %vm314, %v309, %v311
      %v317 = vsel %vm314, %v313, %v309
      %v321 = vrot.slane %v317, 4
      %v322 = vrot.slane %v316, 4
      %v323 = vrot.slane %v315, 4
      %327 = vst [vmem:[#allocation2 + $0x18] sm:$0xf0] %v321
      %328 = vst [vmem:[#allocation2 + $0x20] sm:$0xf0] %v322
      %329 = vst [vmem:[#allocation2 + $0x28] sm:$0xf0] %v323
      %330 = vst [vmem:[#allocation2 + $0x30] sm:$0xf] %v252
      %331 = vst [vmem:[#allocation2 + $0x38] sm:$0xf] %v256
      %332 = vst [vmem:[#allocation2 + $0x40] sm:$0xf] %v253
      %333 = vrot.lane.b32.xlu0 %v252, 127
      %v334 = vpop.permute.xlu0 %333
      %335 = vrot.lane.b32.xlu0 %v256, 127
      %v336 = vpop.permute.xlu0 %335
      %337 = vrot.lane.b32.xlu0 %v253, 127
      %v338 = vpop.permute.xlu0 %337
      %vm339 = vcmp.lt.s32.totalorder %v265, 127
      %v340 = vsel %vm339, %v336, %v338
      %v341 = vsel %vm339, %v334, %v336
      %v342 = vsel %vm339, %v338, %v334
      %v346 = vrot.slane %v341, 4
      %v347 = vrot.slane %v340, 4
      %v348 = vrot.slane %v342, 4
      %352 = vst [vmem:[#allocation2 + $0x30] sm:$0xf0] %v346
      %353 = vst [vmem:[#allocation2 + $0x38] sm:$0xf0] %v347
      %354 = vst [vmem:[#allocation2 + $0x40] sm:$0xf0] %v348
      %355 = vrot.lane.b32.xlu0 %v252, 111
      %v356 = vpop.permute.xlu0 %355
      %357 = vrot.lane.b32.xlu0 %v256, 111
      %v358 = vpop.permute.xlu0 %357
      %359 = vrot.lane.b32.xlu0 %v253, 111
      %v360 = vpop.permute.xlu0 %359
      %vm361 = vcmp.lt.s32.totalorder %v265, 111
      %v362 = vsel %vm361, %v358, %v360
      %v363 = vsel %vm361, %v356, %v358
      %v364 = vsel %vm361, %v360, %v356
      %365 = vst [vmem:[#allocation2 + $0x48] sm:$0xf] %v363
      %366 = vst [vmem:[#allocation2 + $0x50] sm:$0xf] %v362
      %367 = vst [vmem:[#allocation2 + $0x58] sm:$0xf] %v364
      %368 = vrot.lane.b32.xlu0 %v252, 110
      %v369 = vpop.permute.xlu0 %368
      %370 = vrot.lane.b32.xlu0 %v256, 110
      %v371 = vpop.permute.xlu0 %370
      %372 = vrot.lane.b32.xlu0 %v253, 110
      %v373 = vpop.permute.xlu0 %372
      %vm374 = vcmp.lt.s32.totalorder %v265, 110
      %v375 = vsel %vm374, %v371, %v373
      %v376 = vsel %vm374, %v369, %v371
      %v377 = vsel %vm374, %v373, %v369
      %v381 = vrot.slane %v376, 4
      %v382 = vrot.slane %v375, 4
      %v383 = vrot.slane %v377, 4
      %387 = vst [vmem:[#allocation2 + $0x48] sm:$0xf0] %v381
      %388 = vst [vmem:[#allocation2 + $0x50] sm:$0xf0] %v382
      %389 = vst [vmem:[#allocation2 + $0x58] sm:$0xf0] %v383
      %390 = vrot.lane.b32.xlu0 %v252, 109
      %v391 = vpop.permute.xlu0 %390
      %392 = vrot.lane.b32.xlu0 %v256, 109
      %v393 = vpop.permute.xlu0 %392
      %394 = vrot.lane.b32.xlu0 %v253, 109
      %v395 = vpop.permute.xlu0 %394
      %vm396 = vcmp.lt.s32.totalorder %v265, 109
      %v397 = vsel %vm396, %v393, %v395
      %v398 = vsel %vm396, %v391, %v393
      %v399 = vsel %vm396, %v395, %v391
      %400 = vst [vmem:[#allocation2 + $0x60] sm:$0xf] %v398
      %401 = vst [vmem:[#allocation2 + $0x68] sm:$0xf] %v397
      %402 = vst [vmem:[#allocation2 + $0x70] sm:$0xf] %v399
      %v403 = vld [vmem:[%s2] sm:$0xf]
      %v404 = vld [vmem:[#allocation2] sm:$0xff]
      %v405 = vld [vmem:[#allocation2 + $0x8] sm:$0xff]
      %v406 = vld [vmem:[#allocation2 + $0x10] sm:$0xff]
      %v407 = vld [vmem:[#allocation2 + $0x18] sm:$0xff]
      %v408 = vld [vmem:[#allocation2 + $0x20] sm:$0xff]
      %v409 = vld [vmem:[#allocation2 + $0x28] sm:$0xff]
      %v410 = vld [vmem:[#allocation2 + $0x30] sm:$0xff]
      %v411 = vld [vmem:[#allocation2 + $0x38] sm:$0xff]
      %v412 = vld [vmem:[#allocation2 + $0x40] sm:$0xff]
      %v413 = vld [vmem:[#allocation2 + $0x48] sm:$0xff]
      %v414 = vld [vmem:[#allocation2 + $0x50] sm:$0xff]
      %v415 = vld [vmem:[#allocation2 + $0x58] sm:$0xff]
      %v416 = vld [vmem:[#allocation2 + $0x60] sm:$0xf]
      %v417 = vld [vmem:[#allocation2 + $0x68] sm:$0xf]
      %v418 = vld [vmem:[#allocation2 + $0x70] sm:$0xf]
      %v419 = vld [vmem:[%s3] sm:$0xf]
      %421 = vset.pattern.permute.xlu0 0
      %422 = vperm.xlu0 %421, %v419
      %v423 = vpop.permute.xlu0 %422
      %vm425 = vcmask 293888
      %v427 = vsel %vm425, %v403, 0
      %vm429 = vcmask 1043456
      %v431 = vsel %vm429, %v416, 0
      %v434 = vsel %vm429, %v417, 0
      %v437 = vsel %vm429, %v418, 0
      %439 = vmatprep.subr.mxu0 %v405
      %440 = vmatpush1.msra.mxu0 %v404
      %441 = vmatprep.subr.mxu0 %v408
      %442 = vmatpush1.msra.mxu0 %v407
      %443 = vmatprep.subr.mxu0 %v411
      %444 = vmatpush1.msra.mxu0 %v410
      %445 = vmatprep.subr.mxu0 %v414
      %446 = vmatpush1.msra.mxu0 %v413
      %447 = vmatprep.subr.mxu0 %v434
      %448 = vmatpush1.msra.mxu0 %v431
      %449 = vmatprep.subr.mxu0 0.0
      %450 = vmatpush1.msra.mxu0 0.0
      %451 = vmatprep.subr.mxu0 0.0
      %452 = vmatpush1.msra.mxu0 0.0
      %453 = vmatprep.subr.mxu0 0.0
      %454 = vmatpush1.msra.mxu0 0.0
      %455 = vmatprep.subr.mxu0 0.0
      %456 = vmatpush1.msra.mxu0 0.0
      %457 = vmatprep.subr.mxu0 0.0
      %458 = vmatpush1.msra.mxu0 0.0
      %459 = vmatprep.subr.mxu0 0.0
      %460 = vmatpush1.msra.mxu0 0.0
      %461 = vmatprep.subr.mxu0 0.0
      %462 = vmatpush1.msra.mxu0 0.0
      %463 = vmatprep.subr.mxu0 0.0
      %464 = vmatpush1.msra.mxu0 0.0
      %465 = vmatprep.subr.mxu0 0.0
      %466 = vmatpush1.msra.mxu0 0.0
      %467 = vmatprep.subr.mxu0 0.0
      %468 = vmatpush1.msra.mxu0 0.0
      %469 = vmatprep.subr.mxu0 0.0
      %470 = vmatpush1.msra.mxu0 0.0
      %471 = vmatprep.subr.mxu0 0.0
      %472 = vmatpush1.msra.mxu0 0.0
      %473 = vmatprep.subr.mxu0 0.0
      %474 = vmatpush1.msra.mxu0 0.0
      %475 = vmatprep.subr.mxu0 0.0
      %476 = vmatpush1.msra.mxu0 0.0
      %477 = vmatprep.subr.mxu0 0.0
      %478 = vmatpush1.msra.mxu0 0.0
      %479 = vmatprep.subr.mxu0 0.0
      %480 = vmatpush1.msra.mxu0 0.0
      %481 = vmatprep.subr.mxu0 0.0
      %482 = vmatpush1.msra.mxu0 0.0
      %483 = vmatprep.subr.mxu0 0.0
      %484 = vmatpush1.msra.mxu0 0.0
      %485 = vmatprep.subr.mxu0 0.0
      %486 = vmatpush1.msra.mxu0 0.0
      %487 = vmatprep.subr.mxu0 0.0
      %488 = vmatpush1.msra.mxu0 0.0
      %489 = vmatprep.subr.mxu0 0.0
      %490 = vmatpush1.msra.mxu0 0.0
      %491 = vmatprep.subr.mxu0 0.0
      %492 = vmatpush1.msra.mxu0 0.0
      %493 = vmatprep.subr.mxu0 0.0
      %494 = vmatpush1.msra.mxu0 0.0
      %495 = vmatprep.subr.mxu0 0.0
      %496 = vmatpush1.msra.mxu0 0.0
      %497 = vmatprep.subr.mxu0 0.0
      %498 = vmatpush1.msra.mxu0 0.0
      %499 = vmatprep.subr.mxu0 0.0
      %500 = vmatpush1.msra.mxu0 0.0
      %501 = vmatprep.subr.mxu0 0.0
      %502 = vmatpush1.msra.mxu0 0.0
      %503 = vmatprep.mubr.f32.mxu0 0.0
      %504 = vmatmul.mubr.f32.gmra.mrb[0].mxu0 %v427
      %v505 = vpop.f32.mrb[0].mxu0
      %v506 = vadd.f32 %v423, %v505
      %v507 = vpop.f32.mrb[0].mxu0
      %v508 = vadd.f32 %v423, %v507
      %509 = vdwg.mxu0
      %510 = vmatprep.subr.mxu0 0.0
      %511 = vmatpush1.msra.mxu0 %v406
      %512 = vmatprep.subr.mxu0 0.0
      %513 = vmatpush1.msra.mxu0 %v409
      %514 = vmatprep.subr.mxu0 0.0
      %515 = vmatpush1.msra.mxu0 %v412
      %516 = vmatprep.subr.mxu0 0.0
      %517 = vmatpush1.msra.mxu0 %v415
      %518 = vmatprep.subr.mxu0 0.0
      %519 = vmatpush1.msra.mxu0 %v437
      %520 = vmatprep.subr.mxu0 0.0
      %521 = vmatpush1.msra.mxu0 0.0
      %522 = vmatprep.subr.mxu0 0.0
      %523 = vmatpush1.msra.mxu0 0.0
      %524 = vmatprep.subr.mxu0 0.0
      %525 = vmatpush1.msra.mxu0 0.0
      %526 = vmatprep.subr.mxu0 0.0
      %527 = vmatpush1.msra.mxu0 0.0
      %528 = vmatprep.subr.mxu0 0.0
      %529 = vmatpush1.msra.mxu0 0.0
      %530 = vmatprep.subr.mxu0 0.0
      %531 = vmatpush1.msra.mxu0 0.0
      %532 = vmatprep.subr.mxu0 0.0
      %533 = vmatpush1.msra.mxu0 0.0
      %534 = vmatprep.subr.mxu0 0.0
      %535 = vmatpush1.msra.mxu0 0.0
      %536 = vmatprep.subr.mxu0 0.0
      %537 = vmatpush1.msra.mxu0 0.0
      %538 = vmatprep.subr.mxu0 0.0
      %539 = vmatpush1.msra.mxu0 0.0
      %540 = vmatprep.subr.mxu0 0.0
      %541 = vmatpush1.msra.mxu0 0.0
      %542 = vmatprep.subr.mxu0 0.0
      %543 = vmatpush1.msra.mxu0 0.0
      %544 = vmatprep.subr.mxu0 0.0
      %545 = vmatpush1.msra.mxu0 0.0
      %546 = vmatprep.subr.mxu0 0.0
      %547 = vmatpush1.msra.mxu0 0.0
      %548 = vmatprep.subr.mxu0 0.0
      %549 = vmatpush1.msra.mxu0 0.0
      %550 = vmatprep.subr.mxu0 0.0
      %551 = vmatpush1.msra.mxu0 0.0
      %552 = vmatprep.subr.mxu0 0.0
      %553 = vmatpush1.msra.mxu0 0.0
      %554 = vmatprep.subr.mxu0 0.0
      %555 = vmatpush1.msra.mxu0 0.0
      %556 = vmatprep.subr.mxu0 0.0
      %557 = vmatpush1.msra.mxu0 0.0
      %558 = vmatprep.subr.mxu0 0.0
      %559 = vmatpush1.msra.mxu0 0.0
      %560 = vmatprep.subr.mxu0 0.0
      %561 = vmatpush1.msra.mxu0 0.0
      %562 = vmatprep.subr.mxu0 0.0
      %563 = vmatpush1.msra.mxu0 0.0
      %564 = vmatprep.subr.mxu0 0.0
      %565 = vmatpush1.msra.mxu0 0.0
      %566 = vmatprep.subr.mxu0 0.0
      %567 = vmatpush1.msra.mxu0 0.0
      %568 = vmatprep.subr.mxu0 0.0
      %569 = vmatpush1.msra.mxu0 0.0
      %570 = vmatprep.subr.mxu0 0.0
      %571 = vmatpush1.msra.mxu0 0.0
      %572 = vmatprep.subr.mxu0 0.0
      %573 = vmatpush1.msra.mxu0 0.0
      %574 = vmatprep.mubr.f32.mxu0 0.0
      %575 = vmatmul.mubr.f32.gmra.mrb[0].mxu0 %v427
      %v576 = vpop.f32.mrb[0].mxu0
      %v577 = vadd.f32 %v423, %v576
      %v578 = vpop.f32.mrb[0].mxu0
      %579 = vdwg.mxu0
      %v580 = vmax.f32 %v506, 0.0
      %v581 = vmax.f32 %v508, 0.0
      %v582 = vmax.f32 %v577, 0.0
      %v584 = vlaneseq
      %v585 = vshrl.u32 %v584, 7
      %v586 = vsub.s32 0, %v585
      %v587 = vrot.slane %v254, %v586
      %v588 = vlaneseq
      %v589 = vshrl.u32 %v588, 7
      %v590 = vsub.s32 1, %v589
      %v591 = vrot.slane %v254, %v590
      %v592 = vlaneseq
      %v593 = vshrl.u32 %v592, 7
      %v594 = vsub.s32 2, %v593
      %v595 = vrot.slane %v254, %v594
      %v599 = vmul.f32 %v580, %v587
      %v600 = vmul.f32 %v581, %v591
      %v601 = vmul.f32 %v582, %v595
      %602 = vrot.lane.b32.xlu0 %v599, 19
      %v603 = vpop.permute.xlu0 %602
      %604 = vrot.lane.b32.xlu0 %v600, 19
      %v605 = vpop.permute.xlu0 %604
      %606 = vrot.lane.b32.xlu0 %v601, 19
      %v607 = vpop.permute.xlu0 %606
      %v608 = vsel %vm266, %v605, %v607
      %v609 = vsel %vm266, %v603, %v605
      %v610 = vsel %vm266, %v607, %v603
      %611 = vst [vmem:[#allocation2] sm:$0xf] %v610
      %612 = vst [vmem:[#allocation2 + $0x8] sm:$0xf] %v609
      %613 = vst [vmem:[#allocation2 + $0x10] sm:$0xf] %v608
      %614 = vrot.lane.b32.xlu0 %v599, 18
      %v615 = vpop.permute.xlu0 %614
      %616 = vrot.lane.b32.xlu0 %v600, 18
      %v617 = vpop.permute.xlu0 %616
      %618 = vrot.lane.b32.xlu0 %v601, 18
      %v619 = vpop.permute.xlu0 %618
      %v620 = vsel %vm279, %v617, %v619
      %v621 = vsel %vm279, %v615, %v617
      %v622 = vsel %vm279, %v619, %v615
      %v626 = vrot.slane %v622, 4
      %v627 = vrot.slane %v621, 4
      %v628 = vrot.slane %v620, 4
      %632 = vst [vmem:[#allocation2] sm:$0xf0] %v626
      %633 = vst [vmem:[#allocation2 + $0x8] sm:$0xf0] %v627
      %634 = vst [vmem:[#allocation2 + $0x10] sm:$0xf0] %v628
      %635 = vrot.lane.b32.xlu0 %v599, 17
      %v636 = vpop.permute.xlu0 %635
      %637 = vrot.lane.b32.xlu0 %v600, 17
      %v638 = vpop.permute.xlu0 %637
      %639 = vrot.lane.b32.xlu0 %v601, 17
      %v640 = vpop.permute.xlu0 %639
      %v641 = vsel %vm301, %v638, %v640
      %v642 = vsel %vm301, %v636, %v638
      %v643 = vsel %vm301, %v640, %v636
      %644 = vst [vmem:[#allocation2 + $0x18] sm:$0xf] %v643
      %645 = vst [vmem:[#allocation2 + $0x20] sm:$0xf] %v642
      %646 = vst [vmem:[#allocation2 + $0x28] sm:$0xf] %v641
      %647 = vrot.lane.b32.xlu0 %v599, 1
      %v648 = vpop.permute.xlu0 %647
      %649 = vrot.lane.b32.xlu0 %v600, 1
      %v650 = vpop.permute.xlu0 %649
      %651 = vrot.lane.b32.xlu0 %v601, 1
      %v652 = vpop.permute.xlu0 %651
      %v653 = vsel %vm314, %v650, %v652
      %v654 = vsel %vm314, %v648, %v650
      %v655 = vsel %vm314, %v652, %v648
      %v659 = vrot.slane %v655, 4
      %v660 = vrot.slane %v654, 4
      %v661 = vrot.slane %v653, 4
      %665 = vst [vmem:[#allocation2 + $0x18] sm:$0xf0] %v659
      %666 = vst [vmem:[#allocation2 + $0x20] sm:$0xf0] %v660
      %667 = vst [vmem:[#allocation2 + $0x28] sm:$0xf0] %v661
      %668 = vst [vmem:[#allocation2 + $0x30] sm:$0xf] %v599
      %669 = vst [vmem:[#allocation2 + $0x38] sm:$0xf] %v600
      %670 = vst [vmem:[#allocation2 + $0x40] sm:$0xf] %v601
      %671 = vrot.lane.b32.xlu0 %v599, 127
      %v672 = vpop.permute.xlu0 %671
      %673 = vrot.lane.b32.xlu0 %v600, 127
      %v674 = vpop.permute.xlu0 %673
      %675 = vrot.lane.b32.xlu0 %v601, 127
      %v676 = vpop.permute.xlu0 %675
      %v677 = vsel %vm339, %v674, %v676
      %v678 = vsel %vm339, %v672, %v674
      %v679 = vsel %vm339, %v676, %v672
      %v683 = vrot.slane %v678, 4
      %v684 = vrot.slane %v677, 4
      %v685 = vrot.slane %v679, 4
      %689 = vst [vmem:[#allocation2 + $0x30] sm:$0xf0] %v683
      %690 = vst [vmem:[#allocation2 + $0x38] sm:$0xf0] %v684
      %691 = vst [vmem:[#allocation2 + $0x40] sm:$0xf0] %v685
      %692 = vrot.lane.b32.xlu0 %v599, 111
      %v693 = vpop.permute.xlu0 %692
      %694 = vrot.lane.b32.xlu0 %v600, 111
      %v695 = vpop.permute.xlu0 %694
      %696 = vrot.lane.b32.xlu0 %v601, 111
      %v697 = vpop.permute.xlu0 %696
      %v698 = vsel %vm361, %v695, %v697
      %v699 = vsel %vm361, %v693, %v695
      %v700 = vsel %vm361, %v697, %v693
      %701 = vst [vmem:[#allocation2 + $0x48] sm:$0xf] %v699
      %702 = vst [vmem:[#allocation2 + $0x50] sm:$0xf] %v698
      %703 = vst [vmem:[#allocation2 + $0x58] sm:$0xf] %v700
      %704 = vrot.lane.b32.xlu0 %v599, 110
      %v705 = vpop.permute.xlu0 %704
      %706 = vrot.lane.b32.xlu0 %v600, 110
      %v707 = vpop.permute.xlu0 %706
      %708 = vrot.lane.b32.xlu0 %v601, 110
      %v709 = vpop.permute.xlu0 %708
      %v710 = vsel %vm374, %v707, %v709
      %v711 = vsel %vm374, %v705, %v707
      %v712 = vsel %vm374, %v709, %v705
      %v716 = vrot.slane %v711, 4
      %v717 = vrot.slane %v710, 4
      %v718 = vrot.slane %v712, 4
      %722 = vst [vmem:[#allocation2 + $0x48] sm:$0xf0] %v716
      %723 = vst [vmem:[#allocation2 + $0x50] sm:$0xf0] %v717
      %724 = vst [vmem:[#allocation2 + $0x58] sm:$0xf0] %v718
      %725 = vrot.lane.b32.xlu0 %v599, 109
      %v726 = vpop.permute.xlu0 %725
      %727 = vrot.lane.b32.xlu0 %v600, 109
      %v728 = vpop.permute.xlu0 %727
      %729 = vrot.lane.b32.xlu0 %v601, 109
      %v730 = vpop.permute.xlu0 %729
      %v731 = vsel %vm396, %v728, %v730
      %v732 = vsel %vm396, %v726, %v728
      %v733 = vsel %vm396, %v730, %v726
      %734 = vst [vmem:[#allocation2 + $0x60] sm:$0xf] %v732
      %735 = vst [vmem:[#allocation2 + $0x68] sm:$0xf] %v731
      %736 = vst [vmem:[#allocation2 + $0x70] sm:$0xf] %v733
      %v737 = vld [vmem:[%s4] sm:$0xf]
      %v738 = vld [vmem:[#allocation2] sm:$0xff]
      %v739 = vld [vmem:[#allocation2 + $0x8] sm:$0xff]
      %v740 = vld [vmem:[#allocation2 + $0x10] sm:$0xff]
      %v741 = vld [vmem:[#allocation2 + $0x18] sm:$0xff]
      %v742 = vld [vmem:[#allocation2 + $0x20] sm:$0xff]
      %v743 = vld [vmem:[#allocation2 + $0x28] sm:$0xff]
      %v744 = vld [vmem:[#allocation2 + $0x30] sm:$0xff]
      %v745 = vld [vmem:[#allocation2 + $0x38] sm:$0xff]
      %v746 = vld [vmem:[#allocation2 + $0x40] sm:$0xff]
      %v747 = vld [vmem:[#allocation2 + $0x48] sm:$0xff]
      %v748 = vld [vmem:[#allocation2 + $0x50] sm:$0xff]
      %v749 = vld [vmem:[#allocation2 + $0x58] sm:$0xff]
      %v750 = vld [vmem:[#allocation2 + $0x60] sm:$0xf]
      %v751 = vld [vmem:[#allocation2 + $0x68] sm:$0xf]
      %v752 = vld [vmem:[#allocation2 + $0x70] sm:$0xf]
      %v754 = vsel %vm425, %v737, 0
      %v757 = vsel %vm429, %v750, 0
      %v760 = vsel %vm429, %v751, 0
      %v763 = vsel %vm429, %v752, 0
      %765 = vmatprep.subr.mxu0 %v739
      %766 = vmatpush1.msra.mxu0 %v738
      %767 = vmatprep.subr.mxu0 %v742
      %768 = vmatpush1.msra.mxu0 %v741
      %769 = vmatprep.subr.mxu0 %v745
      %770 = vmatpush1.msra.mxu0 %v744
      %771 = vmatprep.subr.mxu0 %v748
      %772 = vmatpush1.msra.mxu0 %v747
      %773 = vmatprep.subr.mxu0 %v760
      %774 = vmatpush1.msra.mxu0 %v757
      %775 = vmatprep.subr.mxu0 0.0
      %776 = vmatpush1.msra.mxu0 0.0
      %777 = vmatprep.subr.mxu0 0.0
      %778 = vmatpush1.msra.mxu0 0.0
      %779 = vmatprep.subr.mxu0 0.0
      %780 = vmatpush1.msra.mxu0 0.0
      %781 = vmatprep.subr.mxu0 0.0
      %782 = vmatpush1.msra.mxu0 0.0
      %783 = vmatprep.subr.mxu0 0.0
      %784 = vmatpush1.msra.mxu0 0.0
      %785 = vmatprep.subr.mxu0 0.0
      %786 = vmatpush1.msra.mxu0 0.0
      %787 = vmatprep.subr.mxu0 0.0
      %788 = vmatpush1.msra.mxu0 0.0
      %789 = vmatprep.subr.mxu0 0.0
      %790 = vmatpush1.msra.mxu0 0.0
      %791 = vmatprep.subr.mxu0 0.0
      %792 = vmatpush1.msra.mxu0 0.0
      %793 = vmatprep.subr.mxu0 0.0
      %794 = vmatpush1.msra.mxu0 0.0
      %795 = vmatprep.subr.mxu0 0.0
      %796 = vmatpush1.msra.mxu0 0.0
      %797 = vmatprep.subr.mxu0 0.0
      %798 = vmatpush1.msra.mxu0 0.0
      %799 = vmatprep.subr.mxu0 0.0
      %800 = vmatpush1.msra.mxu0 0.0
      %801 = vmatprep.subr.mxu0 0.0
      %802 = vmatpush1.msra.mxu0 0.0
      %803 = vmatprep.subr.mxu0 0.0
      %804 = vmatpush1.msra.mxu0 0.0
      %805 = vmatprep.subr.mxu0 0.0
      %806 = vmatpush1.msra.mxu0 0.0
      %807 = vmatprep.subr.mxu0 0.0
      %808 = vmatpush1.msra.mxu0 0.0
      %809 = vmatprep.subr.mxu0 0.0
      %810 = vmatpush1.msra.mxu0 0.0
      %811 = vmatprep.subr.mxu0 0.0
      %812 = vmatpush1.msra.mxu0 0.0
      %813 = vmatprep.subr.mxu0 0.0
      %814 = vmatpush1.msra.mxu0 0.0
      %815 = vmatprep.subr.mxu0 0.0
      %816 = vmatpush1.msra.mxu0 0.0
      %817 = vmatprep.subr.mxu0 0.0
      %818 = vmatpush1.msra.mxu0 0.0
      %819 = vmatprep.subr.mxu0 0.0
      %820 = vmatpush1.msra.mxu0 0.0
      %821 = vmatprep.subr.mxu0 0.0
      %822 = vmatpush1.msra.mxu0 0.0
      %823 = vmatprep.subr.mxu0 0.0
      %824 = vmatpush1.msra.mxu0 0.0
      %825 = vmatprep.subr.mxu0 0.0
      %826 = vmatpush1.msra.mxu0 0.0
      %827 = vmatprep.subr.mxu0 0.0
      %828 = vmatpush1.msra.mxu0 0.0
      %829 = vmatprep.mubr.f32.mxu0 0.0
      %830 = vmatmul.mubr.f32.gmra.mrb[0].mxu0 %v754
      %v831 = vpop.f32.mrb[0].mxu0
      %v832 = vadd.f32 0.0, %v831
      %v833 = vpop.f32.mrb[0].mxu0
      %v834 = vadd.f32 0.0, %v833
      %835 = vdwg.mxu0
      %836 = vmatprep.subr.mxu0 0.0
      %837 = vmatpush1.msra.mxu0 %v740
      %838 = vmatprep.subr.mxu0 0.0
      %839 = vmatpush1.msra.mxu0 %v743
      %840 = vmatprep.subr.mxu0 0.0
      %841 = vmatpush1.msra.mxu0 %v746
      %842 = vmatprep.subr.mxu0 0.0
      %843 = vmatpush1.msra.mxu0 %v749
      %844 = vmatprep.subr.mxu0 0.0
      %845 = vmatpush1.msra.mxu0 %v763
      %846 = vmatprep.subr.mxu0 0.0
      %847 = vmatpush1.msra.mxu0 0.0
      %848 = vmatprep.subr.mxu0 0.0
      %849 = vmatpush1.msra.mxu0 0.0
      %850 = vmatprep.subr.mxu0 0.0
      %851 = vmatpush1.msra.mxu0 0.0
      %852 = vmatprep.subr.mxu0 0.0
      %853 = vmatpush1.msra.mxu0 0.0
      %854 = vmatprep.subr.mxu0 0.0
      %855 = vmatpush1.msra.mxu0 0.0
      %856 = vmatprep.subr.mxu0 0.0
      %857 = vmatpush1.msra.mxu0 0.0
      %858 = vmatprep.subr.mxu0 0.0
      %859 = vmatpush1.msra.mxu0 0.0
      %860 = vmatprep.subr.mxu0 0.0
      %861 = vmatpush1.msra.mxu0 0.0
      %862 = vmatprep.subr.mxu0 0.0
      %863 = vmatpush1.msra.mxu0 0.0
      %864 = vmatprep.subr.mxu0 0.0
      %865 = vmatpush1.msra.mxu0 0.0
      %866 = vmatprep.subr.mxu0 0.0
      %867 = vmatpush1.msra.mxu0 0.0
      %868 = vmatprep.subr.mxu0 0.0
      %869 = vmatpush1.msra.mxu0 0.0
      %870 = vmatprep.subr.mxu0 0.0
      %871 = vmatpush1.msra.mxu0 0.0
      %872 = vmatprep.subr.mxu0 0.0
      %873 = vmatpush1.msra.mxu0 0.0
      %874 = vmatprep.subr.mxu0 0.0
      %875 = vmatpush1.msra.mxu0 0.0
      %876 = vmatprep.subr.mxu0 0.0
      %877 = vmatpush1.msra.mxu0 0.0
      %878 = vmatprep.subr.mxu0 0.0
      %879 = vmatpush1.msra.mxu0 0.0
      %880 = vmatprep.subr.mxu0 0.0
      %881 = vmatpush1.msra.mxu0 0.0
      %882 = vmatprep.subr.mxu0 0.0
      %883 = vmatpush1.msra.mxu0 0.0
      %884 = vmatprep.subr.mxu0 0.0
      %885 = vmatpush1.msra.mxu0 0.0
      %886 = vmatprep.subr.mxu0 0.0
      %887 = vmatpush1.msra.mxu0 0.0
      %888 = vmatprep.subr.mxu0 0.0
      %889 = vmatpush1.msra.mxu0 0.0
      %890 = vmatprep.subr.mxu0 0.0
      %891 = vmatpush1.msra.mxu0 0.0
      %892 = vmatprep.subr.mxu0 0.0
      %893 = vmatpush1.msra.mxu0 0.0
      %894 = vmatprep.subr.mxu0 0.0
      %895 = vmatpush1.msra.mxu0 0.0
      %896 = vmatprep.subr.mxu0 0.0
      %897 = vmatpush1.msra.mxu0 0.0
      %898 = vmatprep.subr.mxu0 0.0
      %899 = vmatpush1.msra.mxu0 0.0
      %900 = vmatprep.mubr.f32.mxu0 0.0
      %901 = vmatmul.mubr.f32.gmra.mrb[0].mxu0 %v754
      %v902 = vpop.f32.mrb[0].mxu0
      %v903 = vadd.f32 0.0, %v902
      %v904 = vpop.f32.mrb[0].mxu0
      %905 = vdwg.mxu0
      %v908 = vcombine.low %v832, %v834
      %v910 = vadd.f32 %v252, %v908
      %v911 = vadd.f32 %v253, %v903
      %v912 = vld [vmem:[%s5] sm:$0xf]
      %914 = vset.pattern.permute.xlu0 0
      %915 = vperm.xlu0 %914, %v912
      %v916 = vpop.permute.xlu0 %915
      %v918 = vunpack.c.l.s4 839922192
      %v919 = vunpack.c.0.s8 %v918
      %v920 = vlaneseq
      %v921 = vshrl.u32 %v920, 7
      %v922 = vsub.s32 %v919, %v921
      %v923 = vrot.slane %v916, %v922
      %v925 = vadd.f32 %v910, %v923
      %v926 = vadd.f32 %v911, %v923
      %v927 = vcombine.low %v587, %v591
      %v929 = vmul.f32 %v925, %v927
      %v930 = vmul.f32 %v926, %v595
      %931 = vst [vmem:[%s251] sm:$0xff] %v929
      %932 = vst [vmem:[%s251 + $0x8] sm:$0xf] %v930
      %p933 = scmp.lt.s32.totalorder %s17, 1
      %s934 = scalar_select %p933, %s17, 1
      %s935 = smul.addr %s934, 3
      %s936 = smul.addr %s935, 4
      %s937 = scalar_lea.vmem %s6, %s936
      // Predicated region
      $region45: #{resblock_pallas.1} parent=43 // pred_check
        %p938 = pneg %p166
      $region46: #{resblock_pallas.1} parent=43 // pred_check_branch
        %940 = sbr.rel (%p938) target = $region48
      $region47: #{resblock_pallas.1} parent=43 // pred_region
        _
      $region48: #{resblock_pallas.1} parent=43 // pred_fallthru
        _
    $region44: #{resblock_pallas.1} parent=5 // pred_fallthru
      _
    %p941 = scmp.le.s32.totalorder 2, %s12
    // Predicated region
    $region49: #{resblock_pallas.1} parent=5 // pred_check
      %p942 = pneg %p941
    $region50: #{resblock_pallas.1} parent=5 // pred_check_branch
      %944 = sbr.rel (%p942) target = $region52
    $region51: #{resblock_pallas.1} parent=5 // pred_region
      %s945 = ssub.s32 %s12, 2
      // Predicated region
      $region53: #{resblock_pallas.1} parent=51 // pred_check
        %p946 = pneg %p172
      $region54: #{resblock_pallas.1} parent=51 // pred_check_branch
        %948 = sbr.rel (%p946) target = $region56
      $region55: #{resblock_pallas.1} parent=51 // pred_region
        %p949 = scmp.lt.s32.totalorder %s18, 1
        %s950 = scalar_select %p949, %s18, 1
        %s951 = smul.addr %s950, 3
        %s952 = smul.addr %s951, 4
        %s953 = scalar_lea.vmem %s6, %s952
      $region56: #{resblock_pallas.1} parent=51 // pred_fallthru
        _
    $region52: #{resblock_pallas.1} parent=5 // pred_fallthru
      _
  $region6: #{resblock_pallas.1} parent=0 // loop_footer
    %s16 = sadd.s32 1, %s12
  $region7: #{resblock_pallas.1} parent=0 // loop_footer_branch
    %11 = sbr.rel target = $region3
  $region8: #{resblock_pallas.1} parent=0 // loop_exit
    _

</llo_original>
